<compile_context>
chip_gen: v7x
topology: tpu7x:2x2x1
jax: 0.10.0
libtpu: 0.0.40
codegen_flags: <defaults>
</compile_context>

<pallas_src>
import jax
import jax.numpy as jnp
from jax.experimental import pallas as pl
from jax.experimental.pallas import tpu as pltpu


def mlp_kernel(x_ref, w1_ref, b1_ref, w2_ref, b2_ref, out_ref):
    """Fused 2-layer MLP tile: out = relu(x @ w1 + b1) @ w2 + b2.

    x_ref:  (TILE_B, D_in)  f32   (cast to bf16 here, on the VPU)
    w1_ref: (D_in, H)       bf16  (grid-invariant, VMEM-resident)
    b1_ref: (1, H)          f32
    w2_ref: (H, C_pad)      bf16  (grid-invariant, VMEM-resident)
    b2_ref: (1, C_pad)      f32
    out_ref:(TILE_B, C_pad) f32
    """
    # In-kernel f32 -> bf16 cast (free on the VPU; avoids a wrapper HBM pass).
    x = x_ref[...].astype(jnp.bfloat16)

    # First layer: bf16 MXU matmul, f32 accumulate, f32 bias + ReLU (VPU).
    h = jnp.dot(x, w1_ref[...], preferred_element_type=jnp.float32) + b1_ref[...]
    h = jnp.maximum(h, 0.0).astype(jnp.bfloat16)

    # Second layer: bf16 MXU matmul, f32 accumulate, f32 bias.
    out = jnp.dot(h, w2_ref[...], preferred_element_type=jnp.float32) + b2_ref[...]
    out_ref[...] = out.astype(out_ref.dtype)


def _round_up(v, m):
    return ((v + m - 1) // m) * m


def _choose_tile_b(b, d_in, c_pad, hidden, *, max_tile_b=1024,
                   vmem_budget=24 << 20):
    """Pick the batch-tile row count.

    Large enough to beat the ~0.35 us per-grid-step overhead, a multiple of
    16 rows (sublane-pack safe even if x were bf16), capped so the
    double-buffered f32 x/out tiles + double-buffered weights stay within a
    conservative VMEM budget (fits v7x's 32 MiB default scoped limit), and
    split into >=2 tiles for big batches so v7x's two TensorCores both work.
    """
    per_row = 2 * d_in * 4 + 2 * c_pad * 4                       # x + out, dbl-buffered
    weight_bytes = 2 * (d_in * hidden + hidden * c_pad) * 2      # bf16 w1/w2, dbl-buffered
    weight_bytes += 2 * (hidden + c_pad) * 4                     # f32 biases
    cap = max(16, (vmem_budget - weight_bytes) // per_row)
    cap = max(16, (cap // 16) * 16)
    tile_b = min(max_tile_b, cap)

    if b <= tile_b:
        # Whole batch fits in one tile; a full-extent block is always
        # layout-legal regardless of divisibility.
        tile_b = b
        if b >= 256:
            # v7x: split so both TensorCores get a tile (harmless elsewhere).
            tile_b = min(b, _round_up(pl.cdiv(b, 2), 256))
    return tile_b


def mlp_classifier_forward(x, w1, b1, w2, b2, *, max_tile_b=1024):
    """Fused MLP forward.

    Args:
      x:  (B, 3, H, W) float32 image batch (NCHW, same as PyTorch).
      w1: (D_in, hidden) float32  -- transposed nn.Linear weight.
      b1: (hidden,) float32
      w2: (hidden, num_classes) float32 -- transposed nn.Linear weight.
      b2: (num_classes,) float32

    Returns:
      (B, num_classes) float32 logits.
    """
    b = x.shape[0]
    d_in = x.shape[1] * x.shape[2] * x.shape[3]
    hidden = w1.shape[1]
    num_classes = w2.shape[1]

    # Lane-dense output: pad the class dim to a multiple of 128 lanes.
    c_pad = _round_up(num_classes, 128)

    # Flatten exactly like torch's x.view(b, -1) on NCHW. Stays f32: the
    # bf16 cast happens inside the kernel (no extra HBM round trip over x).
    x_flat = x.reshape(b, d_in)

    # Small, one-shot weight prep (bf16 MXU inputs, class-dim pad).
    w1_bf = w1.astype(jnp.bfloat16)
    w2_bf = jnp.pad(w2, ((0, 0), (0, c_pad - num_classes))).astype(jnp.bfloat16)
    b1_2d = b1.reshape(1, hidden).astype(jnp.float32)
    b2_2d = jnp.pad(b2.reshape(1, num_classes),
                    ((0, 0), (0, c_pad - num_classes))).astype(jnp.float32)

    tile_b = _choose_tile_b(b, d_in, c_pad, hidden, max_tile_b=max_tile_b)
    num_tiles = pl.cdiv(b, tile_b)

    out = pl.pallas_call(
        mlp_kernel,
        out_shape=jax.ShapeDtypeStruct((b, c_pad), jnp.float32),
        grid_spec=pl.GridSpec(
            grid=(num_tiles,),
            in_specs=[
                # x: tiled along batch (last block may be ragged; Pallas masks
                # the writeback, and rows are independent under matmul).
                pl.BlockSpec((tile_b, d_in), lambda i: (i, 0)),
                # Weights / biases: same block every step -> VMEM-resident.
                pl.BlockSpec((d_in, hidden), lambda i: (0, 0)),
                pl.BlockSpec((1, hidden), lambda i: (0, 0)),
                pl.BlockSpec((hidden, c_pad), lambda i: (0, 0)),
                pl.BlockSpec((1, c_pad), lambda i: (0, 0)),
            ],
            out_specs=pl.BlockSpec((tile_b, c_pad), lambda i: (i, 0)),
        ),
        compiler_params=pltpu.CompilerParams(
            dimension_semantics=("parallel",),
            vmem_limit_bytes=32 << 20,
        ),
    )(x_flat, w1_bf, b1_2d, w2_bf, b2_2d)

    # Only the class-dim slice remains (batch is un-padded). A fused consumer
    # (softmax/loss kernel) could take the lane-dense (B, c_pad) block as-is.
    return out[:, :num_classes]


if __name__ == "__main__":
    # Small shapes consistent with the module: batch=2, 3 channels, 16x16 image.
    B, C_IN, H, W = 2, 3, 16, 16
    HIDDEN = 128
    NUM_CLASSES = 6
    D_IN = C_IN * H * W  # 768

    key = jax.random.PRNGKey(0)
    k_x, k_w1, k_b1, k_w2, k_b2 = jax.random.split(key, 5)

    x = jax.random.normal(k_x, (B, C_IN, H, W), dtype=jnp.float32)

    # Deterministic init mimicking nn.Linear's uniform(-1/sqrt(fan_in), 1/sqrt(fan_in)).
    lim1 = 1.0 / jnp.sqrt(jnp.float32(D_IN))
    w1 = jax.random.uniform(k_w1, (D_IN, HIDDEN), jnp.float32, -lim1, lim1)
    b1 = jax.random.uniform(k_b1, (HIDDEN,), jnp.float32, -lim1, lim1)

    lim2 = 1.0 / jnp.sqrt(jnp.float32(HIDDEN))
    w2 = jax.random.uniform(k_w2, (HIDDEN, NUM_CLASSES), jnp.float32, -lim2, lim2)
    b2 = jax.random.uniform(k_b2, (NUM_CLASSES,), jnp.float32, -lim2, lim2)

    logits = mlp_classifier_forward(x, w1, b1, w2, b2)
    logits = jax.block_until_ready(logits)
    assert logits.shape == (B, NUM_CLASSES)

    # Reference 1: mirror the kernel's bf16-input / f32-accumulate math.
    x_flat = x.reshape(B, D_IN)
    xb = x_flat.astype(jnp.bfloat16)
    w1b = w1.astype(jnp.bfloat16)
    w2b = w2.astype(jnp.bfloat16)
    h_ref = jnp.maximum(
        jnp.dot(xb, w1b, preferred_element_type=jnp.float32) + b1, 0.0
    ).astype(jnp.bfloat16)
    ref_bf16 = jnp.dot(h_ref, w2b, preferred_element_type=jnp.float32) + b2
    assert jnp.allclose(logits, ref_bf16, atol=1e-3, rtol=1e-3)

    # Reference 2: pure-f32 semantics of the original module (loose tolerance
    # to cover the bf16 MXU-input rounding).
    ref_f32 = jnp.maximum(x_flat @ w1 + b1, 0.0) @ w2 + b2
    assert jnp.allclose(logits, ref_f32, atol=5e-2, rtol=5e-2)

    print("KERNEL_OK")
</pallas_src>

<mosaic_0001>
module attributes {stable_mosaic.version = 11 : i64} {
  func.func @mlp_kernel(%arg0: i32, %arg1: memref<2x768xf32, #tpu.memory_space<vmem>>, %arg2: memref<768x128xbf16, #tpu.memory_space<vmem>>, %arg3: memref<1x128xf32, #tpu.memory_space<vmem>>, %arg4: memref<128x128xbf16, #tpu.memory_space<vmem>>, %arg5: memref<1x128xf32, #tpu.memory_space<vmem>>, %arg6: memref<2x128xf32, #tpu.memory_space<vmem>>) attributes {dimension_semantics = [#tpu.dimension_semantics<parallel>], iteration_bounds = array<i64: 1>, scalar_prefetch = 0 : i64, scratch_operands = 0 : i64, tpu.core_type = #tpu.core_type<tc>, window_params = [{transform_indices = @transform_0, window_bounds = array<i64: 2, 768>}, {pipeline_mode = #tpu.pipeline_mode<synchronous>, transform_indices = @transform_1, window_bounds = array<i64: 768, 128>}, {pipeline_mode = #tpu.pipeline_mode<synchronous>, transform_indices = @transform_2, window_bounds = array<i64: 1, 128>}, {pipeline_mode = #tpu.pipeline_mode<synchronous>, transform_indices = @transform_3, window_bounds = array<i64: 128, 128>}, {pipeline_mode = #tpu.pipeline_mode<synchronous>, transform_indices = @transform_4, window_bounds = array<i64: 1, 128>}, {transform_indices = @transform_5, window_bounds = array<i64: 2, 128>}]} {
    %c0 = arith.constant 0 : index
    %c0_0 = arith.constant 0 : index
    %0 = vector.load %arg1[%c0, %c0_0] : memref<2x768xf32, #tpu.memory_space<vmem>>, vector<2x768xf32>
    %1 = arith.truncf %0 : vector<2x768xf32> to vector<2x768xbf16>
    %c0_1 = arith.constant 0 : index
    %c0_2 = arith.constant 0 : index
    %2 = vector.load %arg2[%c0_1, %c0_2] : memref<768x128xbf16, #tpu.memory_space<vmem>>, vector<768x128xbf16>
    %cst = arith.constant dense<0.000000e+00> : vector<2x128xf32>
    %3 = tpu.matmul %1, %2, %cst {dimension_numbers = #tpu.dot_dimension_numbers<[1], [0], [0], [1], [0, 0, 1, 1], [], []>} : vector<2x768xbf16>, vector<768x128xbf16>, vector<2x128xf32> -> vector<2x128xf32>
    %c0_3 = arith.constant 0 : index
    %c0_4 = arith.constant 0 : index
    %4 = vector.load %arg3[%c0_3, %c0_4] : memref<1x128xf32, #tpu.memory_space<vmem>>, vector<1x128xf32>
    %5 = vector.broadcast %4 : vector<1x128xf32> to vector<2x128xf32>
    %6 = arith.addf %3, %5 : vector<2x128xf32>
    %cst_5 = arith.constant 0.000000e+00 : f32
    %7 = vector.broadcast %cst_5 : f32 to vector<2x128xf32>
    %8 = arith.maximumf %6, %7 : vector<2x128xf32>
    %9 = arith.truncf %8 : vector<2x128xf32> to vector<2x128xbf16>
    %c0_6 = arith.constant 0 : index
    %c0_7 = arith.constant 0 : index
    %10 = vector.load %arg4[%c0_6, %c0_7] : memref<128x128xbf16, #tpu.memory_space<vmem>>, vector<128x128xbf16>
    %cst_8 = arith.constant dense<0.000000e+00> : vector<2x128xf32>
    %11 = tpu.matmul %9, %10, %cst_8 {dimension_numbers = #tpu.dot_dimension_numbers<[1], [0], [0], [1], [0, 0, 1, 1], [], []>} : vector<2x128xbf16>, vector<128x128xbf16>, vector<2x128xf32> -> vector<2x128xf32>
    %c0_9 = arith.constant 0 : index
    %c0_10 = arith.constant 0 : index
    %12 = vector.load %arg5[%c0_9, %c0_10] : memref<1x128xf32, #tpu.memory_space<vmem>>, vector<1x128xf32>
    %13 = vector.broadcast %12 : vector<1x128xf32> to vector<2x128xf32>
    %14 = arith.addf %11, %13 : vector<2x128xf32>
    %c0_11 = arith.constant 0 : index
    %c0_12 = arith.constant 0 : index
    %15 = vector.load %arg6[%c0_11, %c0_12] : memref<2x128xf32, #tpu.memory_space<vmem>>, vector<2x128xf32>
    tpu.vector_store %arg6[%c0_11, %c0_12], %14 {strides = array<i32>} : memref<2x128xf32, #tpu.memory_space<vmem>>, vector<2x128xf32>,
    return
  }
  func.func @transform_0(%arg0: i32) -> (i32, i32) {
    %c0_i32 = arith.constant 0 : i32
    %c0_i32_0 = arith.constant 0 : i32
    return %arg0, %c0_i32 : i32, i32
  }
  func.func @transform_1(%arg0: i32) -> (i32, i32) {
    %c0_i32 = arith.constant 0 : i32
    %c0_i32_0 = arith.constant 0 : i32
    %c0_i32_1 = arith.constant 0 : i32
    return %c0_i32, %c0_i32_0 : i32, i32
  }
  func.func @transform_2(%arg0: i32) -> (i32, i32) {
    %c0_i32 = arith.constant 0 : i32
    %c0_i32_0 = arith.constant 0 : i32
    %c0_i32_1 = arith.constant 0 : i32
    return %c0_i32, %c0_i32_0 : i32, i32
  }
  func.func @transform_3(%arg0: i32) -> (i32, i32) {
    %c0_i32 = arith.constant 0 : i32
    %c0_i32_0 = arith.constant 0 : i32
    %c0_i32_1 = arith.constant 0 : i32
    return %c0_i32, %c0_i32_0 : i32, i32
  }
  func.func @transform_4(%arg0: i32) -> (i32, i32) {
    %c0_i32 = arith.constant 0 : i32
    %c0_i32_0 = arith.constant 0 : i32
    %c0_i32_1 = arith.constant 0 : i32
    return %c0_i32, %c0_i32_0 : i32, i32
  }
  func.func @transform_5(%arg0: i32) -> (i32, i32) {
    %c0_i32 = arith.constant 0 : i32
    %c0_i32_0 = arith.constant 0 : i32
    return %arg0, %c0_i32 : i32, i32
  }
}

</mosaic_0001>

<llo_original>
// kernel: tpu_custom_call.1
$region0: #{tpu_custom_call.1}
  #allocation0 [shape = 'u32[]', space=smem, size = 0x4, offset = 0x4, fixed_abs, tag = 'smem constant byte address 0x4 - core index']
  #allocation1 [shape = 'u32[144,128]{1,0:T(1,128)}', space=vmem, size = 0x12000, scoped, tag = 'internal scratch']
  %s0 = inlined_call_operand.hbm [shape: f32[2,768], index: 0, kind: input, shape index: {}]
  %s1 = inlined_call_operand.hbm [shape: bf16[768,128], index: 1, kind: input, shape index: {}]
  %s2 = inlined_call_operand.vmem [shape: f32[1,128], index: 2, kind: input, shape index: {}]
  %s3 = inlined_call_operand.hbm [shape: bf16[128,128], index: 3, kind: input, shape index: {}]
  %s4 = inlined_call_operand.vmem [shape: f32[1,128], index: 4, kind: input, shape index: {}]
  %s5 = inlined_call_operand.hbm [shape: f32[2,128], index: 5, kind: output, shape index: {}]
  %s6 = sld [smem:[#allocation0]]
  $region42: #{tpu_custom_call.1} parent=0
    _
  %s8 = ssub.s32 1, %s6
  %s9 = scalar_select 0, %s8, %s6
  $region1: #{tpu_custom_call.1} parent=0
    #allocation2 [shape = 'u8[6144]{0}', space=vmem, size = 0x1800, scoped, tag = 'input window, operand 0, single buffered']
    #allocation3 [shape = 's32[1]{0}', space=sflag, size = 0x4, scoped, tag = 'scoped memory for tpu_custom_call.1']
    #allocation4 [shape = 's32[1]{0}', space=sflag, size = 0x4, scoped, tag = 'scoped memory for tpu_custom_call.1']
    #allocation5 [shape = 'u8[196608]{0}', space=vmem, size = 0x30000, scoped, tag = 'input window, operand 1, single buffered']
    #allocation6 [shape = 's32[1]{0}', space=sflag, size = 0x4, scoped, tag = 'scoped memory for tpu_custom_call.1']
    #allocation7 [shape = 'u8[32768]{0}', space=vmem, size = 0x8000, scoped, tag = 'input window, operand 3, single buffered']
    #allocation8 [shape = 'u8[1024]{0}', space=vmem, size = 0x400, scoped, tag = 'output window, operand 0, single buffered']
    %10 = vsyncpa [#allocation3], 0
    %11 = vsyncpa [#allocation6], 0
    %12 = vsyncpa [#allocation4], 0
    // Predicated region
    $region2: #{tpu_custom_call.1} parent=1 // pred_check
      _
    $region3: #{tpu_custom_call.1} parent=1 // pred_check_branch
      %14 = sbr.rel (0) target = $region5
    $region4: #{tpu_custom_call.1} parent=1 // pred_region
      %s16 = ssub.s32 192, 192
      %17 = vsyncadd [#allocation3], %s16
      %s19 = sshll.u32 [#allocation2], 4
      %s20 = int_to_ptr.vmem [resolvable:$true] %s19
      %22 = dma.hbm_to_vmem [thread:$0]  %s0, 192, %s20, [#allocation3]
    $region5: #{tpu_custom_call.1} parent=1 // pred_fallthru
      _
    // Predicated region
    $region6: #{tpu_custom_call.1} parent=1 // pred_check
      _
    $region7: #{tpu_custom_call.1} parent=1 // pred_check_branch
      %24 = sbr.rel (0) target = $region9
    $region8: #{tpu_custom_call.1} parent=1 // pred_region
      %s26 = ssub.s32 6144, 6144
      %27 = vsyncadd [#allocation6], %s26
      %s28 = sshll.u32 [#allocation5], 4
      %s29 = int_to_ptr.vmem [resolvable:$true] %s28
      %34 = dma.hbm_to_vmem [thread:$0]  %s1, 6144, %s29, [#allocation6], 64, 64, 4
    $region9: #{tpu_custom_call.1} parent=1 // pred_fallthru
      _
    // Predicated region
    $region10: #{tpu_custom_call.1} parent=1 // pred_check
      _
    $region11: #{tpu_custom_call.1} parent=1 // pred_check_branch
      %36 = sbr.rel (0) target = $region13
    $region12: #{tpu_custom_call.1} parent=1 // pred_region
      _
    $region13: #{tpu_custom_call.1} parent=1 // pred_fallthru
      _
    // Predicated region
    $region14: #{tpu_custom_call.1} parent=1 // pred_check
      _
    $region15: #{tpu_custom_call.1} parent=1 // pred_check_branch
      %38 = sbr.rel (0) target = $region17
    $region16: #{tpu_custom_call.1} parent=1 // pred_region
      %s40 = ssub.s32 1024, 1024
      %41 = vsyncadd [#allocation6], %s40
      %s42 = sshll.u32 [#allocation7], 4
      %s43 = int_to_ptr.vmem [resolvable:$true] %s42
      %48 = dma.hbm_to_vmem [thread:$0]  %s3, 1024, %s43, [#allocation6], 64, 64, 4
    $region17: #{tpu_custom_call.1} parent=1 // pred_fallthru
      _
    // Predicated region
    $region18: #{tpu_custom_call.1} parent=1 // pred_check
      _
    $region19: #{tpu_custom_call.1} parent=1 // pred_check_branch
      %50 = sbr.rel (0) target = $region21
    $region20: #{tpu_custom_call.1} parent=1 // pred_region
      _
    $region21: #{tpu_custom_call.1} parent=1 // pred_fallthru
      _
    // Predicated region
    $region22: #{tpu_custom_call.1} parent=1 // pred_check
      _
    $region23: #{tpu_custom_call.1} parent=1 // pred_check_branch
      %52 = sbr.rel (0) target = $region25
    $region24: #{tpu_custom_call.1} parent=1 // pred_region
      %53 = dma.done [#allocation3], 192
    $region25: #{tpu_custom_call.1} parent=1 // pred_fallthru
      _
    // Predicated region
    $region26: #{tpu_custom_call.1} parent=1 // pred_check
      _
    $region27: #{tpu_custom_call.1} parent=1 // pred_check_branch
      %55 = sbr.rel (0) target = $region29
    $region28: #{tpu_custom_call.1} parent=1 // pred_region
      %56 = dma.done [#allocation6], 6144
    $region29: #{tpu_custom_call.1} parent=1 // pred_fallthru
      _
    // Predicated region
    $region30: #{tpu_custom_call.1} parent=1 // pred_check
      _
    $region31: #{tpu_custom_call.1} parent=1 // pred_check_branch
      %58 = sbr.rel (0) target = $region33
    $region32: #{tpu_custom_call.1} parent=1 // pred_region
      %59 = dma.done [#allocation6], 1024
    $region33: #{tpu_custom_call.1} parent=1 // pred_fallthru
      _
    %v61 = vld [vmem:[#allocation2] sm:$0xff]
    %v62 = vld [vmem:[#allocation2 + $0x8] sm:$0xf]
    %v65 = vcombine.high %v61, %v61
    %v67 = vunpack.c.l.s4 1983009808
    %v68 = vunpack.c.0.s8 %v67
    %v69 = vlaneseq
    %v70 = vshrl.u32 %v69, 7
    %v71 = vsub.s32 %v68, %v70
    %v72 = vrot.slane %v61, %v71
    %v74 = vunpack.c.l.s4 1983009808
    %v75 = vunpack.c.0.s8 %v74
    %v76 = vlaneseq
    %v77 = vshrl.u32 %v76, 7
    %v78 = vsub.s32 %v75, %v77
    %v79 = vrot.slane %v65, %v78
    %v80 = vcombine.high %v72, %v72
    %v81 = vcombine.high %v79, %v79
    %v83 = vunpack.c.l.s4 1983009808
    %v84 = vunpack.c.0.s8 %v83
    %v85 = vlaneseq
    %v86 = vshrl.u32 %v85, 7
    %v87 = vsub.s32 %v84, %v86
    %v88 = vrot.slane %v62, %v87
    %v89 = vcombine.high %v88, %v88
    %v96 = vpack.c.bf16 %v72, %v72
    %v97 = vpack.c.bf16 %v80, %v80
    %v98 = vpack.c.bf16 %v79, %v79
    %v99 = vpack.c.bf16 %v81, %v81
    %v100 = vpack.c.bf16 %v88, %v88
    %v101 = vpack.c.bf16 %v89, %v89
    %v102 = vld [vmem:[#allocation5] sm:$0xf]
    %v103 = vld [vmem:[#allocation5 + $0x4] sm:$0xf]
    %v104 = vld [vmem:[#allocation5 + $0x8] sm:$0xf]
    %v105 = vld [vmem:[#allocation5 + $0xc] sm:$0xf]
    %v106 = vld [vmem:[#allocation5 + $0x10] sm:$0xf]
    %v107 = vld [vmem:[#allocation5 + $0x14] sm:$0xf]
    %v108 = vld [vmem:[#allocation5 + $0x18] sm:$0xf]
    %v109 = vld [vmem:[#allocation5 + $0x1c] sm:$0xf]
    %v110 = vld [vmem:[#allocation5 + $0x20] sm:$0xf]
    %v111 = vld [vmem:[#allocation5 + $0x24] sm:$0xf]
    %v112 = vld [vmem:[#allocation5 + $0x28] sm:$0xf]
    %v113 = vld [vmem:[#allocation5 + $0x2c] sm:$0xf]
    %v114 = vld [vmem:[#allocation5 + $0x30] sm:$0xf]
    %v115 = vld [vmem:[#allocation5 + $0x34] sm:$0xf]
    %v116 = vld [vmem:[#allocation5 + $0x38] sm:$0xf]
    %v117 = vld [vmem:[#allocation5 + $0x3c] sm:$0xf]
    %v118 = vld [vmem:[#allocation5 + $0x40] sm:$0xf]
    %v119 = vld [vmem:[#allocation5 + $0x44] sm:$0xf]
    %v120 = vld [vmem:[#allocation5 + $0x48] sm:$0xf]
    %v121 = vld [vmem:[#allocation5 + $0x4c] sm:$0xf]
    %v122 = vld [vmem:[#allocation5 + $0x50] sm:$0xf]
    %v123 = vld [vmem:[#allocation5 + $0x54] sm:$0xf]
    %v124 = vld [vmem:[#allocation5 + $0x58] sm:$0xf]
    %v125 = vld [vmem:[#allocation5 + $0x5c] sm:$0xf]
    %v126 = vld [vmem:[#allocation5 + $0x60] sm:$0xf]
    %v127 = vld [vmem:[#allocation5 + $0x64] sm:$0xf]
    %v128 = vld [vmem:[#allocation5 + $0x68] sm:$0xf]
    %v129 = vld [vmem:[#allocation5 + $0x6c] sm:$0xf]
    %v130 = vld [vmem:[#allocation5 + $0x70] sm:$0xf]
    %v131 = vld [vmem:[#allocation5 + $0x74] sm:$0xf]
    %v132 = vld [vmem:[#allocation5 + $0x78] sm:$0xf]
    %v133 = vld [vmem:[#allocation5 + $0x7c] sm:$0xf]
    %v134 = vld [vmem:[#allocation5 + $0x80] sm:$0xf]
    %v135 = vld [vmem:[#allocation5 + $0x84] sm:$0xf]
    %v136 = vld [vmem:[#allocation5 + $0x88] sm:$0xf]
    %v137 = vld [vmem:[#allocation5 + $0x8c] sm:$0xf]
    %v138 = vld [vmem:[#allocation5 + $0x90] sm:$0xf]
    %v139 = vld [vmem:[#allocation5 + $0x94] sm:$0xf]
    %v140 = vld [vmem:[#allocation5 + $0x98] sm:$0xf]
    %v141 = vld [vmem:[#allocation5 + $0x9c] sm:$0xf]
    %v142 = vld [vmem:[#allocation5 + $0xa0] sm:$0xf]
    %v143 = vld [vmem:[#allocation5 + $0xa4] sm:$0xf]
    %v144 = vld [vmem:[#allocation5 + $0xa8] sm:$0xf]
    %v145 = vld [vmem:[#allocation5 + $0xac] sm:$0xf]
    %v146 = vld [vmem:[#allocation5 + $0xb0] sm:$0xf]
    %v147 = vld [vmem:[#allocation5 + $0xb4] sm:$0xf]
    %v148 = vld [vmem:[#allocation5 + $0xb8] sm:$0xf]
    %v149 = vld [vmem:[#allocation5 + $0xbc] sm:$0xf]
    %v150 = vld [vmem:[#allocation5 + $0xc0] sm:$0xf]
    %v151 = vld [vmem:[#allocation5 + $0xc4] sm:$0xf]
    %v152 = vld [vmem:[#allocation5 + $0xc8] sm:$0xf]
    %v153 = vld [vmem:[#allocation5 + $0xcc] sm:$0xf]
    %v154 = vld [vmem:[#allocation5 + $0xd0] sm:$0xf]
    %v155 = vld [vmem:[#allocation5 + $0xd4] sm:$0xf]
    %v156 = vld [vmem:[#allocation5 + $0xd8] sm:$0xf]
    %v157 = vld [vmem:[#allocation5 + $0xdc] sm:$0xf]
    %v158 = vld [vmem:[#allocation5 + $0xe0] sm:$0xf]
    %v159 = vld [vmem:[#allocation5 + $0xe4] sm:$0xf]
    %v160 = vld [vmem:[#allocation5 + $0xe8] sm:$0xf]
    %v161 = vld [vmem:[#allocation5 + $0xec] sm:$0xf]
    %v162 = vld [vmem:[#allocation5 + $0xf0] sm:$0xf]
    %v163 = vld [vmem:[#allocation5 + $0xf4] sm:$0xf]
    %v164 = vld [vmem:[#allocation5 + $0xf8] sm:$0xf]
    %v165 = vld [vmem:[#allocation5 + $0xfc] sm:$0xf]
    %v166 = vld [vmem:[#allocation5 + $0x100] sm:$0xf]
    %v167 = vld [vmem:[#allocation5 + $0x104] sm:$0xf]
    %v168 = vld [vmem:[#allocation5 + $0x108] sm:$0xf]
    %v169 = vld [vmem:[#allocation5 + $0x10c] sm:$0xf]
    %v170 = vld [vmem:[#allocation5 + $0x110] sm:$0xf]
    %v171 = vld [vmem:[#allocation5 + $0x114] sm:$0xf]
    %v172 = vld [vmem:[#allocation5 + $0x118] sm:$0xf]
    %v173 = vld [vmem:[#allocation5 + $0x11c] sm:$0xf]
    %v174 = vld [vmem:[#allocation5 + $0x120] sm:$0xf]
    %v175 = vld [vmem:[#allocation5 + $0x124] sm:$0xf]
    %v176 = vld [vmem:[#allocation5 + $0x128] sm:$0xf]
    %v177 = vld [vmem:[#allocation5 + $0x12c] sm:$0xf]
    %v178 = vld [vmem:[#allocation5 + $0x130] sm:$0xf]
    %v179 = vld [vmem:[#allocation5 + $0x134] sm:$0xf]
    %v180 = vld [vmem:[#allocation5 + $0x138] sm:$0xf]
    %v181 = vld [vmem:[#allocation5 + $0x13c] sm:$0xf]
    %v182 = vld [vmem:[#allocation5 + $0x140] sm:$0xf]
    %v183 = vld [vmem:[#allocation5 + $0x144] sm:$0xf]
    %v184 = vld [vmem:[#allocation5 + $0x148] sm:$0xf]
    %v185 = vld [vmem:[#allocation5 + $0x14c] sm:$0xf]
    %v186 = vld [vmem:[#allocation5 + $0x150] sm:$0xf]
    %v187 = vld [vmem:[#allocation5 + $0x154] sm:$0xf]
    %v188 = vld [vmem:[#allocation5 + $0x158] sm:$0xf]
    %v189 = vld [vmem:[#allocation5 + $0x15c] sm:$0xf]
    %v190 = vld [vmem:[#allocation5 + $0x160] sm:$0xf]
    %v191 = vld [vmem:[#allocation5 + $0x164] sm:$0xf]
    %v192 = vld [vmem:[#allocation5 + $0x168] sm:$0xf]
    %v193 = vld [vmem:[#allocation5 + $0x16c] sm:$0xf]
    %v194 = vld [vmem:[#allocation5 + $0x170] sm:$0xf]
    %v195 = vld [vmem:[#allocation5 + $0x174] sm:$0xf]
    %v196 = vld [vmem:[#allocation5 + $0x178] sm:$0xf]
    %v197 = vld [vmem:[#allocation5 + $0x17c] sm:$0xf]
    %v198 = vld [vmem:[%s2] sm:$0x1]
    %v200 = vlaneseq
    %v201 = vshrl.u32 %v200, 7
    %v202 = vsub.s32 0, %v201
    %v203 = vrot.slane %v198, %v202
    %v301 = vunpack.c.l.b16 %v102
    %v302 = vunpack.c.l.b16 %v103
    %v303 = vunpack.c.l.b16 %v104
    %v304 = vunpack.c.l.b16 %v105
    %v305 = vunpack.c.l.b16 %v106
    %v306 = vunpack.c.l.b16 %v107
    %v307 = vunpack.c.l.b16 %v108
    %v308 = vunpack.c.l.b16 %v109
    %v309 = vunpack.c.l.b16 %v110
    %v310 = vunpack.c.l.b16 %v111
    %v311 = vunpack.c.l.b16 %v112
    %v312 = vunpack.c.l.b16 %v113
    %v313 = vunpack.c.l.b16 %v114
    %v314 = vunpack.c.l.b16 %v115
    %v315 = vunpack.c.l.b16 %v116
    %v316 = vunpack.c.l.b16 %v117
    %v317 = vunpack.c.l.b16 %v118
    %v318 = vunpack.c.l.b16 %v119
    %v319 = vunpack.c.l.b16 %v120
    %v320 = vunpack.c.l.b16 %v121
    %v321 = vunpack.c.l.b16 %v122
    %v322 = vunpack.c.l.b16 %v123
    %v323 = vunpack.c.l.b16 %v124
    %v324 = vunpack.c.l.b16 %v125
    %v325 = vunpack.c.l.b16 %v126
    %v326 = vunpack.c.l.b16 %v127
    %v327 = vunpack.c.l.b16 %v128
    %v328 = vunpack.c.l.b16 %v129
    %v329 = vunpack.c.l.b16 %v130
    %v330 = vunpack.c.l.b16 %v131
    %v331 = vunpack.c.l.b16 %v132
    %v332 = vunpack.c.l.b16 %v133
    %v333 = vunpack.c.l.b16 %v134
    %v334 = vunpack.c.l.b16 %v135
    %v335 = vunpack.c.l.b16 %v136
    %v336 = vunpack.c.l.b16 %v137
    %v337 = vunpack.c.l.b16 %v138
    %v338 = vunpack.c.l.b16 %v139
    %v339 = vunpack.c.l.b16 %v140
    %v340 = vunpack.c.l.b16 %v141
    %v341 = vunpack.c.l.b16 %v142
    %v342 = vunpack.c.l.b16 %v143
    %v343 = vunpack.c.l.b16 %v144
    %v344 = vunpack.c.l.b16 %v145
    %v345 = vunpack.c.l.b16 %v146
    %v346 = vunpack.c.l.b16 %v147
    %v347 = vunpack.c.l.b16 %v148
    %v348 = vunpack.c.l.b16 %v149
    %v349 = vunpack.c.l.b16 %v150
    %v350 = vunpack.c.l.b16 %v151
    %v351 = vunpack.c.l.b16 %v152
    %v352 = vunpack.c.l.b16 %v153
    %v353 = vunpack.c.l.b16 %v154
    %v354 = vunpack.c.l.b16 %v155
    %v355 = vunpack.c.l.b16 %v156
    %v356 = vunpack.c.l.b16 %v157
    %v357 = vunpack.c.l.b16 %v158
    %v358 = vunpack.c.l.b16 %v159
    %v359 = vunpack.c.l.b16 %v160
    %v360 = vunpack.c.l.b16 %v161
    %v361 = vunpack.c.l.b16 %v162
    %v362 = vunpack.c.l.b16 %v163
    %v363 = vunpack.c.l.b16 %v164
    %v364 = vunpack.c.l.b16 %v165
    %v365 = vunpack.c.l.b16 %v166
    %v366 = vunpack.c.l.b16 %v167
    %v367 = vunpack.c.l.b16 %v168
    %v368 = vunpack.c.l.b16 %v169
    %v369 = vunpack.c.l.b16 %v170
    %v370 = vunpack.c.l.b16 %v171
    %v371 = vunpack.c.l.b16 %v172
    %v372 = vunpack.c.l.b16 %v173
    %v373 = vunpack.c.l.b16 %v174
    %v374 = vunpack.c.l.b16 %v175
    %v375 = vunpack.c.l.b16 %v176
    %v376 = vunpack.c.l.b16 %v177
    %v377 = vunpack.c.l.b16 %v178
    %v378 = vunpack.c.l.b16 %v179
    %v379 = vunpack.c.l.b16 %v180
    %v380 = vunpack.c.l.b16 %v181
    %v381 = vunpack.c.l.b16 %v182
    %v382 = vunpack.c.l.b16 %v183
    %v383 = vunpack.c.l.b16 %v184
    %v384 = vunpack.c.l.b16 %v185
    %v385 = vunpack.c.l.b16 %v186
    %v386 = vunpack.c.l.b16 %v187
    %v387 = vunpack.c.l.b16 %v188
    %v388 = vunpack.c.l.b16 %v189
    %v389 = vunpack.c.l.b16 %v190
    %v390 = vunpack.c.l.b16 %v191
    %v391 = vunpack.c.l.b16 %v192
    %v392 = vunpack.c.l.b16 %v193
    %v393 = vunpack.c.l.b16 %v194
    %v394 = vunpack.c.l.b16 %v195
    %v395 = vunpack.c.l.b16 %v196
    %v396 = vunpack.c.l.b16 %v197
    %v397 = vpack.c.b16 %v302, %v301
    %v398 = vpack.c.b16 %v304, %v303
    %v399 = vpack.c.b16 %v306, %v305
    %v400 = vpack.c.b16 %v308, %v307
    %v401 = vpack.c.b16 %v310, %v309
    %v402 = vpack.c.b16 %v312, %v311
    %v403 = vpack.c.b16 %v314, %v313
    %v404 = vpack.c.b16 %v316, %v315
    %v405 = vpack.c.b16 %v318, %v317
    %v406 = vpack.c.b16 %v320, %v319
    %v407 = vpack.c.b16 %v322, %v321
    %v408 = vpack.c.b16 %v324, %v323
    %v409 = vpack.c.b16 %v326, %v325
    %v410 = vpack.c.b16 %v328, %v327
    %v411 = vpack.c.b16 %v330, %v329
    %v412 = vpack.c.b16 %v332, %v331
    %v413 = vpack.c.b16 %v334, %v333
    %v414 = vpack.c.b16 %v336, %v335
    %v415 = vpack.c.b16 %v338, %v337
    %v416 = vpack.c.b16 %v340, %v339
    %v417 = vpack.c.b16 %v342, %v341
    %v418 = vpack.c.b16 %v344, %v343
    %v419 = vpack.c.b16 %v346, %v345
    %v420 = vpack.c.b16 %v348, %v347
    %v421 = vpack.c.b16 %v350, %v349
    %v422 = vpack.c.b16 %v352, %v351
    %v423 = vpack.c.b16 %v354, %v353
    %v424 = vpack.c.b16 %v356, %v355
    %v425 = vpack.c.b16 %v358, %v357
    %v426 = vpack.c.b16 %v360, %v359
    %v427 = vpack.c.b16 %v362, %v361
    %v428 = vpack.c.b16 %v364, %v363
    %v429 = vpack.c.b16 %v366, %v365
    %v430 = vpack.c.b16 %v368, %v367
    %v431 = vpack.c.b16 %v370, %v369
    %v432 = vpack.c.b16 %v372, %v371
    %v433 = vpack.c.b16 %v374, %v373
    %v434 = vpack.c.b16 %v376, %v375
    %v435 = vpack.c.b16 %v378, %v377
    %v436 = vpack.c.b16 %v380, %v379
    %v437 = vpack.c.b16 %v382, %v381
    %v438 = vpack.c.b16 %v384, %v383
    %v439 = vpack.c.b16 %v386, %v385
    %v440 = vpack.c.b16 %v388, %v387
    %v441 = vpack.c.b16 %v390, %v389
    %v442 = vpack.c.b16 %v392, %v391
    %v443 = vpack.c.b16 %v394, %v393
    %v444 = vpack.c.b16 %v396, %v395
    %493 = vmatprep.subr.bf16.mxu0 0
    %494 = vmatpush1.bf16.msra.mxu0 %v397
    %495 = vmatprep.subr.bf16.mxu0 0
    %496 = vmatpush1.bf16.msra.mxu0 %v398
    %497 = vmatprep.subr.bf16.mxu0 0
    %498 = vmatpush1.bf16.msra.mxu0 %v399
    %499 = vmatprep.subr.bf16.mxu0 0
    %500 = vmatpush1.bf16.msra.mxu0 %v400
    %501 = vmatprep.subr.bf16.mxu0 0
    %502 = vmatpush1.bf16.msra.mxu0 %v401
    %503 = vmatprep.subr.bf16.mxu0 0
    %504 = vmatpush1.bf16.msra.mxu0 %v402
    %505 = vmatprep.subr.bf16.mxu0 0
    %506 = vmatpush1.bf16.msra.mxu0 %v403
    %507 = vmatprep.subr.bf16.mxu0 0
    %508 = vmatpush1.bf16.msra.mxu0 %v404
    %509 = vmatprep.subr.bf16.mxu0 0
    %510 = vmatpush1.bf16.msra.mxu0 %v405
    %511 = vmatprep.subr.bf16.mxu0 0
    %512 = vmatpush1.bf16.msra.mxu0 %v406
    %513 = vmatprep.subr.bf16.mxu0 0
    %514 = vmatpush1.bf16.msra.mxu0 %v407
    %515 = vmatprep.subr.bf16.mxu0 0
    %516 = vmatpush1.bf16.msra.mxu0 %v408
    %517 = vmatprep.subr.bf16.mxu0 0
    %518 = vmatpush1.bf16.msra.mxu0 %v409
    %519 = vmatprep.subr.bf16.mxu0 0
    %520 = vmatpush1.bf16.msra.mxu0 %v410
    %521 = vmatprep.subr.bf16.mxu0 0
    %522 = vmatpush1.bf16.msra.mxu0 %v411
    %523 = vmatprep.subr.bf16.mxu0 0
    %524 = vmatpush1.bf16.msra.mxu0 %v412
    %525 = vmatprep.mubr.bf16.mxu0 %v97
    %526 = vmatmul.mubr.bf16.gmra.mrb[0].mxu0 %v96
    %v527 = vpop.f32.mrb[0].mxu0
    %v528 = vadd.f32 %v203, %v527
    %v529 = vpop.f32.mrb[0].mxu0
    %v530 = vpop.f32.mrb[0].mxu0
    %v531 = vpop.f32.mrb[0].mxu0
    %532 = vdwg.mxu0
    %533 = vmatprep.subr.bf16.mxu0 0
    %534 = vmatpush1.bf16.msra.mxu0 %v413
    %535 = vmatprep.subr.bf16.mxu0 0
    %536 = vmatpush1.bf16.msra.mxu0 %v414
    %537 = vmatprep.subr.bf16.mxu0 0
    %538 = vmatpush1.bf16.msra.mxu0 %v415
    %539 = vmatprep.subr.bf16.mxu0 0
    %540 = vmatpush1.bf16.msra.mxu0 %v416
    %541 = vmatprep.subr.bf16.mxu0 0
    %542 = vmatpush1.bf16.msra.mxu0 %v417
    %543 = vmatprep.subr.bf16.mxu0 0
    %544 = vmatpush1.bf16.msra.mxu0 %v418
    %545 = vmatprep.subr.bf16.mxu0 0
    %546 = vmatpush1.bf16.msra.mxu0 %v419
    %547 = vmatprep.subr.bf16.mxu0 0
    %548 = vmatpush1.bf16.msra.mxu0 %v420
    %549 = vmatprep.subr.bf16.mxu0 0
    %550 = vmatpush1.bf16.msra.mxu0 %v421
    %551 = vmatprep.subr.bf16.mxu0 0
    %552 = vmatpush1.bf16.msra.mxu0 %v422
    %553 = vmatprep.subr.bf16.mxu0 0
    %554 = vmatpush1.bf16.msra.mxu0 %v423
    %555 = vmatprep.subr.bf16.mxu0 0
    %556 = vmatpush1.bf16.msra.mxu0 %v424
    %557 = vmatprep.subr.bf16.mxu0 0
    %558 = vmatpush1.bf16.msra.mxu0 %v425
    %559 = vmatprep.subr.bf16.mxu0 0
    %560 = vmatpush1.bf16.msra.mxu0 %v426
    %561 = vmatprep.subr.bf16.mxu0 0
    %562 = vmatpush1.bf16.msra.mxu0 %v427
    %563 = vmatprep.subr.bf16.mxu0 0
    %564 = vmatpush1.bf16.msra.mxu0 %v428
    %565 = vmatprep.mubr.bf16.mxu0 %v99
    %566 = vmatmul.mubr.bf16.gmra.mrb[0].mxu0 %v98
    %v567 = vpop.f32.mrb[0].mxu0
    %v568 = vadd.f32 %v528, %v567
    %v569 = vpop.f32.mrb[0].mxu0
    %v570 = vpop.f32.mrb[0].mxu0
    %v571 = vpop.f32.mrb[0].mxu0
    %572 = vdwg.mxu0
    %573 = vmatprep.subr.bf16.mxu0 0
    %574 = vmatpush1.bf16.msra.mxu0 %v429
    %575 = vmatprep.subr.bf16.mxu0 0
    %576 = vmatpush1.bf16.msra.mxu0 %v430
    %577 = vmatprep.subr.bf16.mxu0 0
    %578 = vmatpush1.bf16.msra.mxu0 %v431
    %579 = vmatprep.subr.bf16.mxu0 0
    %580 = vmatpush1.bf16.msra.mxu0 %v432
    %581 = vmatprep.subr.bf16.mxu0 0
    %582 = vmatpush1.bf16.msra.mxu0 %v433
    %583 = vmatprep.subr.bf16.mxu0 0
    %584 = vmatpush1.bf16.msra.mxu0 %v434
    %585 = vmatprep.subr.bf16.mxu0 0
    %586 = vmatpush1.bf16.msra.mxu0 %v435
    %587 = vmatprep.subr.bf16.mxu0 0
    %588 = vmatpush1.bf16.msra.mxu0 %v436
    %589 = vmatprep.subr.bf16.mxu0 0
    %590 = vmatpush1.bf16.msra.mxu0 %v437
    %591 = vmatprep.subr.bf16.mxu0 0
    %592 = vmatpush1.bf16.msra.mxu0 %v438
    %593 = vmatprep.subr.bf16.mxu0 0
    %594 = vmatpush1.bf16.msra.mxu0 %v439
    %595 = vmatprep.subr.bf16.mxu0 0
    %596 = vmatpush1.bf16.msra.mxu0 %v440
    %597 = vmatprep.subr.bf16.mxu0 0
    %598 = vmatpush1.bf16.msra.mxu0 %v441
    %599 = vmatprep.subr.bf16.mxu0 0
    %600 = vmatpush1.bf16.msra.mxu0 %v442
    %601 = vmatprep.subr.bf16.mxu0 0
    %602 = vmatpush1.bf16.msra.mxu0 %v443
    %603 = vmatprep.subr.bf16.mxu0 0
    %604 = vmatpush1.bf16.msra.mxu0 %v444
    %605 = vmatprep.mubr.bf16.mxu0 %v101
    %606 = vmatmul.mubr.bf16.gmra.mrb[0].mxu0 %v100
    %v607 = vpop.f32.mrb[0].mxu0
    %v608 = vadd.f32 %v568, %v607
    %v609 = vpop.f32.mrb[0].mxu0
    %v610 = vpop.f32.mrb[0].mxu0
    %v611 = vpop.f32.mrb[0].mxu0
    %612 = vdwg.mxu0
    %v613 = vmax.f32 %v608, 0.0
    %v614 = vpack.c.bf16 %v613, %v613
    %v615 = vld [vmem:[#allocation7] sm:$0xf]
    %v616 = vld [vmem:[#allocation7 + $0x4] sm:$0xf]
    %v617 = vld [vmem:[#allocation7 + $0x8] sm:$0xf]
    %v618 = vld [vmem:[#allocation7 + $0xc] sm:$0xf]
    %v619 = vld [vmem:[#allocation7 + $0x10] sm:$0xf]
    %v620 = vld [vmem:[#allocation7 + $0x14] sm:$0xf]
    %v621 = vld [vmem:[#allocation7 + $0x18] sm:$0xf]
    %v622 = vld [vmem:[#allocation7 + $0x1c] sm:$0xf]
    %v623 = vld [vmem:[#allocation7 + $0x20] sm:$0xf]
    %v624 = vld [vmem:[#allocation7 + $0x24] sm:$0xf]
    %v625 = vld [vmem:[#allocation7 + $0x28] sm:$0xf]
    %v626 = vld [vmem:[#allocation7 + $0x2c] sm:$0xf]
    %v627 = vld [vmem:[#allocation7 + $0x30] sm:$0xf]
    %v628 = vld [vmem:[#allocation7 + $0x34] sm:$0xf]
    %v629 = vld [vmem:[#allocation7 + $0x38] sm:$0xf]
    %v630 = vld [vmem:[#allocation7 + $0x3c] sm:$0xf]
    %v631 = vld [vmem:[%s4] sm:$0x1]
    %v633 = vlaneseq
    %v634 = vshrl.u32 %v633, 7
    %v635 = vsub.s32 0, %v634
    %v636 = vrot.slane %v631, %v635
    %v654 = vunpack.c.l.b16 %v615
    %v655 = vunpack.c.l.b16 %v616
    %v656 = vunpack.c.l.b16 %v617
    %v657 = vunpack.c.l.b16 %v618
    %v658 = vunpack.c.l.b16 %v619
    %v659 = vunpack.c.l.b16 %v620
    %v660 = vunpack.c.l.b16 %v621
    %v661 = vunpack.c.l.b16 %v622
    %v662 = vunpack.c.l.b16 %v623
    %v663 = vunpack.c.l.b16 %v624
    %v664 = vunpack.c.l.b16 %v625
    %v665 = vunpack.c.l.b16 %v626
    %v666 = vunpack.c.l.b16 %v627
    %v667 = vunpack.c.l.b16 %v628
    %v668 = vunpack.c.l.b16 %v629
    %v669 = vunpack.c.l.b16 %v630
    %v670 = vpack.c.b16 %v655, %v654
    %v671 = vpack.c.b16 %v657, %v656
    %v672 = vpack.c.b16 %v659, %v658
    %v673 = vpack.c.b16 %v661, %v660
    %v674 = vpack.c.b16 %v663, %v662
    %v675 = vpack.c.b16 %v665, %v664
    %v676 = vpack.c.b16 %v667, %v666
    %v677 = vpack.c.b16 %v669, %v668
    %686 = vmatprep.subr.bf16.mxu0 0
    %687 = vmatpush1.bf16.msra.mxu0 %v670
    %688 = vmatprep.subr.bf16.mxu0 0
    %689 = vmatpush1.bf16.msra.mxu0 %v671
    %690 = vmatprep.subr.bf16.mxu0 0
    %691 = vmatpush1.bf16.msra.mxu0 %v672
    %692 = vmatprep.subr.bf16.mxu0 0
    %693 = vmatpush1.bf16.msra.mxu0 %v673
    %694 = vmatprep.subr.bf16.mxu0 0
    %695 = vmatpush1.bf16.msra.mxu0 %v674
    %696 = vmatprep.subr.bf16.mxu0 0
    %697 = vmatpush1.bf16.msra.mxu0 %v675
    %698 = vmatprep.subr.bf16.mxu0 0
    %699 = vmatpush1.bf16.msra.mxu0 %v676
    %700 = vmatprep.subr.bf16.mxu0 0
    %701 = vmatpush1.bf16.msra.mxu0 %v677
    %702 = vmatprep.subr.bf16.mxu0 0
    %703 = vmatpush1.bf16.msra.mxu0 0
    %704 = vmatprep.subr.bf16.mxu0 0
    %705 = vmatpush1.bf16.msra.mxu0 0
    %706 = vmatprep.subr.bf16.mxu0 0
    %707 = vmatpush1.bf16.msra.mxu0 0
    %708 = vmatprep.subr.bf16.mxu0 0
    %709 = vmatpush1.bf16.msra.mxu0 0
    %710 = vmatprep.subr.bf16.mxu0 0
    %711 = vmatpush1.bf16.msra.mxu0 0
    %712 = vmatprep.subr.bf16.mxu0 0
    %713 = vmatpush1.bf16.msra.mxu0 0
    %714 = vmatprep.subr.bf16.mxu0 0
    %715 = vmatpush1.bf16.msra.mxu0 0
    %716 = vmatprep.subr.bf16.mxu0 0
    %717 = vmatpush1.bf16.msra.mxu0 0
    %718 = vmatprep.mubr.bf16.mxu0 0
    %719 = vmatmul.mubr.bf16.gmra.mrb[0].mxu0 %v614
    %v720 = vpop.f32.mrb[0].mxu0
    %v721 = vadd.f32 %v636, %v720
    %v722 = vpop.f32.mrb[0].mxu0
    %v723 = vpop.f32.mrb[0].mxu0
    %v724 = vpop.f32.mrb[0].mxu0
    %725 = vdwg.mxu0
    %726 = vst [vmem:[#allocation8] sm:$0x3] %v721
    // Predicated region
    $region34: #{tpu_custom_call.1} parent=1 // pred_check
      _
    $region35: #{tpu_custom_call.1} parent=1 // pred_check_branch
      %728 = sbr.rel (0) target = $region37
    $region36: #{tpu_custom_call.1} parent=1 // pred_region
      %s730 = ssub.s32 32, 32
      %731 = vsyncadd [#allocation4], %s730
      %s733 = sshll.u32 [#allocation8], 4
      %s734 = int_to_ptr.vmem [resolvable:$true] %s733
      %736 = dma.vmem_to_hbm [thread:$0]  %s734, 32, %s5, [#allocation4]
    $region37: #{tpu_custom_call.1} parent=1 // pred_fallthru
      _
    // Predicated region
    $region38: #{tpu_custom_call.1} parent=1 // pred_check
      _
    $region39: #{tpu_custom_call.1} parent=1 // pred_check_branch
      %738 = sbr.rel (0) target = $region41
    $region40: #{tpu_custom_call.1} parent=1 // pred_region
      %739 = dma.done [#allocation4], 32
    $region41: #{tpu_custom_call.1} parent=1 // pred_fallthru
      _
    %740 = vsyncpa [#allocation3], 1
    %741 = vsyncpa [#allocation6], 1
    %742 = vsyncpa [#allocation4], 1

</llo_original>
